<compile_context>
chip_gen: v7x
topology: tpu7x:2x2x1
jax: 0.10.0
libtpu: 0.0.40
codegen_flags: <defaults>
</compile_context>

<pallas_src>
import math

import jax
import jax.numpy as jnp
from jax.experimental import pallas as pl
from jax.experimental.pallas import tpu as pltpu

_LANES = 128
_LOG2 = math.log(2.0)


def _logcosh_stable(x):
    # log(cosh(x)) = |x| + log1p(exp(-2|x|)) - log(2); no f32 overflow, 2 EUP ops.
    a = jnp.abs(x + 1e-12)  # +1e-12 kept for parity with the torch reference
    return a + jnp.log1p(jnp.exp(-2.0 * a)) - _LOG2


def _make_logcosh_kernel(total_rows, block_rows, acc_rows, blocks_per_core,
                         n_blocks_real, needs_mask, two_axis):
    """Kernel with all sizes baked in as Python constants."""
    last_block = n_blocks_real - 1

    def accumulate(out_ref, val):
        # VPU-only partial reduction into the resident (acc_rows, 128)
        # accumulator: acc_rows/8 independent vadd chains, no cross-lane work.
        out_ref[...] += val.reshape(-1, acc_rows, _LANES).sum(axis=0)

    def kernel(y_ref, yp_ref, out_ref):
        if two_axis:
            c = pl.program_id(0)              # TensorCore split ("parallel")
            j = pl.program_id(1)              # streaming reduction axis
            lb = c * blocks_per_core + j      # logical (unclamped) block index
        else:
            j = pl.program_id(0)
            lb = j

        @pl.when(j == 0)
        def _():
            out_ref[...] = jnp.zeros_like(out_ref)

        diff = y_ref[...].astype(jnp.float32) - yp_ref[...].astype(jnp.float32)
        val = _logcosh_stable(diff)

        if needs_mask:
            # Hot path: every block before the last real one accumulates
            # unmasked (bare ~8 VALU + 2 EUP ops per element).
            @pl.when(lb < last_block)
            def _():
                accumulate(out_ref, val)

            # Only the last real block pays the (row-only) mask; clamped
            # duplicate grid blocks (lb > last_block) skip accumulation.
            @pl.when(lb == last_block)
            def _():
                row = jax.lax.broadcasted_iota(jnp.int32, val.shape, 0)
                ok = (lb * block_rows + row) < total_rows
                accumulate(out_ref, jnp.where(ok, val, 0.0))
        else:
            accumulate(out_ref, val)

    return kernel


def logcosh_loss(y_t, y_prime_t, *, block_rows=4096, core_split=1,
                 core_semantics="parallel"):
    """Mean log-cosh loss computed with a Pallas TPU kernel. Returns a scalar.

    block_rows:     128-lane rows per grid step. 4096 (2 MiB f32 block) is safe
                    on every generation; use 8192 on v6e/v7x for best HBM use.
    core_split:     leading grid axis size (default 1). On v7x set core_split=2
                    with core_semantics=pltpu.CORE_PARALLEL to use both TCs.
    core_semantics: semantics tag for the leading axis when core_split > 1.
    """
    assert y_t.shape == y_prime_t.shape
    out_dtype = jnp.result_type(y_t.dtype, y_prime_t.dtype)

    flat = y_t.reshape(-1)
    flat_p = y_prime_t.reshape(-1)
    n_elems = int(flat.shape[0])
    assert n_elems > 0

    rows = n_elems // _LANES           # full 128-lane rows streamed by the kernel
    n_main = rows * _LANES             # 128-aligned prefix length
    tail_sum = jnp.float32(0.0)
    if n_main < n_elems:               # <128 leftover elements: tiny jnp tail
        tail = flat[n_main:].astype(jnp.float32) - flat_p[n_main:].astype(jnp.float32)
        tail_sum = jnp.sum(_logcosh_stable(tail))

    if rows == 0:
        # Degenerate (<128 elements total): nothing for the kernel to stream.
        return (tail_sum / n_elems).astype(out_dtype)

    y2 = (flat[:n_main] if n_main < n_elems else flat).reshape(rows, _LANES)
    yp2 = (flat_p[:n_main] if n_main < n_elems else flat_p).reshape(rows, _LANES)

    # Accumulator width (= output block rows). 32 rows -> 4 independent vreg
    # add chains; fall back for tiny inputs so the block stays spec-legal.
    if rows >= 32:
        acc_rows = 32
    elif rows >= 8:
        acc_rows = 8
    else:
        acc_rows = rows

    req = max(acc_rows, (int(block_rows) // acc_rows) * acc_rows)
    if rows >= acc_rows:
        block_rows_eff = min(req, (rows // acc_rows) * acc_rows)
    else:
        block_rows_eff = rows
    n_blocks_real = -(-rows // block_rows_eff)
    needs_row_mask = (rows % block_rows_eff) != 0

    core_split_eff = max(1, min(int(core_split), n_blocks_real))
    two_axis = core_split_eff > 1
    bpc = -(-n_blocks_real // core_split_eff)      # blocks per core
    has_dup = core_split_eff * bpc != n_blocks_real
    needs_mask = needs_row_mask or has_dup
    last_block = n_blocks_real - 1

    kernel = _make_logcosh_kernel(rows, block_rows_eff, acc_rows, bpc,
                                  n_blocks_real, needs_mask, two_axis)

    in_bytes_per_row = _LANES * (y2.dtype.itemsize + yp2.dtype.itemsize)
    out_rows = core_split_eff * acc_rows

    if two_axis:
        grid = (core_split_eff, bpc)
        # Clamp duplicate grid-padding blocks onto the last real block; their
        # accumulation is skipped in-kernel.
        in_map = lambda c, j: (jnp.minimum(c * bpc + j, last_block), 0)
        out_map = lambda c, j: (c, 0)
        dims = (core_semantics, "arbitrary")
    else:
        grid = (n_blocks_real,)
        in_map = lambda j: (j, 0)
        out_map = lambda j: (0, 0)
        dims = ("arbitrary",)

    # Double-buffered input blocks + headroom, capped under the smallest
    # physical VMEM (v7x: 64 MiB per TensorCore).
    vmem_needed = 2 * block_rows_eff * in_bytes_per_row
    vmem_limit = int(min(64 << 20, max(32 << 20, vmem_needed + (8 << 20))))

    cost = pl.CostEstimate(
        flops=8 * n_main,
        transcendentals=2 * n_main,
        bytes_accessed=rows * in_bytes_per_row + out_rows * _LANES * 4,
    )

    partials = pl.pallas_call(
        kernel,
        out_shape=jax.ShapeDtypeStruct((out_rows, _LANES), jnp.float32),
        grid_spec=pltpu.PrefetchScalarGridSpec(
            num_scalar_prefetch=0,
            grid=grid,
            in_specs=[
                pl.BlockSpec((block_rows_eff, _LANES), in_map),
                pl.BlockSpec((block_rows_eff, _LANES), in_map),
            ],
            out_specs=pl.BlockSpec((acc_rows, _LANES), out_map),
        ),
        compiler_params=pltpu.CompilerParams(
            dimension_semantics=dims,
            vmem_limit_bytes=vmem_limit,
        ),
        cost_estimate=cost,
    )(y2, yp2)

    # One tiny final reduction over the (core_split*acc_rows, 128) partials.
    total = jnp.sum(partials) + tail_sum
    return (total * (1.0 / n_elems)).astype(out_dtype)


def _reference(y_t, y_prime_t):
    return jnp.mean(jnp.log(jnp.cosh((y_t - y_prime_t) + 1e-12)))


if __name__ == "__main__":
    key = jax.random.PRNGKey(0)

    # 1) Aligned regression-loss shape (batch=4, seq=8, feat=32 -> 1024 elems).
    k1, k2 = jax.random.split(key)
    y_t = jax.random.normal(k1, (4, 8, 32), dtype=jnp.float32)
    y_prime_t = jax.random.normal(k2, (4, 8, 32), dtype=jnp.float32)
    loss = logcosh_loss(y_t, y_prime_t)
    jax.block_until_ready(loss)
    ref = _reference(y_t, y_prime_t)
    assert jnp.allclose(loss, ref, rtol=1e-5, atol=1e-6), (loss, ref)

    # 2) Multi-block + core split: exercises (32,128) accumulator, ragged last
    #    block row-mask, and the two-axis "parallel" grid.
    k3, k4 = jax.random.split(k1)
    a = jax.random.normal(k3, (40, 128), dtype=jnp.float32)
    b = jax.random.normal(k4, (40, 128), dtype=jnp.float32)
    loss2 = logcosh_loss(a, b, core_split=2)
    jax.block_until_ready(loss2)
    ref2 = _reference(a, b)
    assert jnp.allclose(loss2, ref2, rtol=1e-5, atol=1e-6), (loss2, ref2)

    # 3) Ragged size (not a multiple of 128): kernel on the aligned prefix,
    #    <128-element tail folded in with jnp (no jnp.pad of the inputs).
    k5, k6 = jax.random.split(k3)
    c = jax.random.normal(k5, (3, 5, 17), dtype=jnp.float32)
    d = jax.random.normal(k6, (3, 5, 17), dtype=jnp.float32)
    loss3 = logcosh_loss(c, d)
    jax.block_until_ready(loss3)
    ref3 = _reference(c, d)
    assert jnp.allclose(loss3, ref3, rtol=1e-5, atol=1e-6), (loss3, ref3)

    # 4) Odd block count + core split: exercises the clamped duplicate block
    #    whose accumulation is skipped in-kernel, and the streaming reduction.
    k7, k8 = jax.random.split(k5)
    e = jax.random.normal(k7, (72, 128), dtype=jnp.float32)
    f = jax.random.normal(k8, (72, 128), dtype=jnp.float32)
    loss4 = logcosh_loss(e, f, block_rows=32, core_split=2)
    jax.block_until_ready(loss4)
    ref4 = _reference(e, f)
    assert jnp.allclose(loss4, ref4, rtol=1e-5, atol=1e-6), (loss4, ref4)

    print("KERNEL_OK")
</pallas_src>

<mosaic_0001>
module attributes {stable_mosaic.version = 11 : i64} {
  func.func @kernel(%arg0: i32, %arg1: memref<8x128xf32, #tpu.memory_space<vmem>>, %arg2: memref<8x128xf32, #tpu.memory_space<vmem>>, %arg3: memref<8x128xf32, #tpu.memory_space<vmem>>) attributes {dimension_semantics = [#tpu.dimension_semantics<arbitrary>], iteration_bounds = array<i64: 1>, scalar_prefetch = 0 : i64, scratch_operands = 0 : i64, tpu.core_type = #tpu.core_type<tc>, window_params = [{transform_indices = @transform_0, window_bounds = array<i64: 8, 128>}, {transform_indices = @transform_1, window_bounds = array<i64: 8, 128>}, {pipeline_mode = #tpu.pipeline_mode<synchronous>, transform_indices = @transform_2, window_bounds = array<i64: 8, 128>}]} {
    %c0_i32 = arith.constant 0 : i32
    %0 = arith.cmpi eq, %arg0, %c0_i32 : i32
    %1 = arith.extui %0 : i1 to i32
    %c0_i32_0 = arith.constant 0 : i32
    %2 = arith.cmpi ne, %1, %c0_i32_0 : i32
    scf.if %2 {
      %cst_11 = arith.constant 0.000000e+00 : f32
      %21 = vector.broadcast %cst_11 : f32 to vector<8x128xf32>
      %c0_12 = arith.constant 0 : index
      %c0_13 = arith.constant 0 : index
      %22 = vector.load %arg3[%c0_12, %c0_13] : memref<8x128xf32, #tpu.memory_space<vmem>>, vector<8x128xf32>
      tpu.vector_store %arg3[%c0_12, %c0_13], %21 {strides = array<i32>} : memref<8x128xf32, #tpu.memory_space<vmem>>, vector<8x128xf32>,
    } else {
    }
    %c0 = arith.constant 0 : index
    %c0_1 = arith.constant 0 : index
    %3 = vector.load %arg1[%c0, %c0_1] : memref<8x128xf32, #tpu.memory_space<vmem>>, vector<8x128xf32>
    %c0_2 = arith.constant 0 : index
    %c0_3 = arith.constant 0 : index
    %4 = vector.load %arg2[%c0_2, %c0_3] : memref<8x128xf32, #tpu.memory_space<vmem>>, vector<8x128xf32>
    %5 = arith.subf %3, %4 : vector<8x128xf32>
    %cst = arith.constant 9.99999996E-13 : f32
    %6 = vector.broadcast %cst : f32 to vector<8x128xf32>
    %7 = arith.addf %5, %6 : vector<8x128xf32>
    %8 = math.absf %7 : vector<8x128xf32>
    %cst_4 = arith.constant -2.000000e+00 : f32
    %9 = vector.broadcast %cst_4 : f32 to vector<8x128xf32>
    %10 = arith.mulf %9, %8 : vector<8x128xf32>
    %11 = math.exp %10 : vector<8x128xf32>
    %12 = math.log1p %11 : vector<8x128xf32>
    %13 = arith.addf %8, %12 : vector<8x128xf32>
    %cst_5 = arith.constant 0.693147182 : f32
    %14 = vector.broadcast %cst_5 : f32 to vector<8x128xf32>
    %15 = arith.subf %13, %14 : vector<8x128xf32>
    %c0_6 = arith.constant 0 : index
    %c0_7 = arith.constant 0 : index
    %16 = vector.load %arg3[%c0_6, %c0_7] : memref<8x128xf32, #tpu.memory_space<vmem>>, vector<8x128xf32>
    %17 = vector.shape_cast %15 : vector<8x128xf32> to vector<1x8x128xf32>
    %cst_8 = arith.constant dense<0.000000e+00> : vector<8x128xf32>
    %18 = vector.multi_reduction <add>, %17, %cst_8 [0] : vector<1x8x128xf32> to vector<8x128xf32>
    %19 = arith.addf %16, %18 : vector<8x128xf32>
    %c0_9 = arith.constant 0 : index
    %c0_10 = arith.constant 0 : index
    %20 = vector.load %arg3[%c0_9, %c0_10] : memref<8x128xf32, #tpu.memory_space<vmem>>, vector<8x128xf32>
    tpu.vector_store %arg3[%c0_9, %c0_10], %19 {strides = array<i32>} : memref<8x128xf32, #tpu.memory_space<vmem>>, vector<8x128xf32>,
    return
  }
  func.func @transform_0(%arg0: i32) -> (i32, i32) {
    %c0_i32 = arith.constant 0 : i32
    %c0_i32_0 = arith.constant 0 : i32
    return %arg0, %c0_i32 : i32, i32
  }
  func.func @transform_1(%arg0: i32) -> (i32, i32) {
    %c0_i32 = arith.constant 0 : i32
    %c0_i32_0 = arith.constant 0 : i32
    return %arg0, %c0_i32 : i32, i32
  }
  func.func @transform_2(%arg0: i32) -> (i32, i32) {
    %c0_i32 = arith.constant 0 : i32
    %c0_i32_0 = arith.constant 0 : i32
    %c0_i32_1 = arith.constant 0 : i32
    return %c0_i32, %c0_i32_0 : i32, i32
  }
}

</mosaic_0001>

<llo_original>
// kernel: tpu_custom_call.1
$region0: #{tpu_custom_call.1}
  #allocation0 [shape = 'u32[]', space=smem, size = 0x4, offset = 0x4, fixed_abs, tag = 'smem constant byte address 0x4 - core index']
  #allocation1 [shape = 'u32[144,128]{1,0:T(1,128)}', space=vmem, size = 0x12000, scoped, tag = 'internal scratch']
  %s0 = inlined_call_operand.hbm [shape: f32[8,128], index: 0, kind: input, shape index: {}]
  %s1 = inlined_call_operand.hbm [shape: f32[8,128], index: 1, kind: input, shape index: {}]
  %s2 = inlined_call_operand.hbm [shape: f32[8,128], index: 2, kind: output, shape index: {}]
  %s3 = sld [smem:[#allocation0]]
  $region30: #{tpu_custom_call.1} parent=0
    _
  %s5 = ssub.s32 1, %s3
  %s6 = scalar_select 0, %s5, %s3
  $region1: #{tpu_custom_call.1} parent=0
    #allocation2 [shape = 'u8[4096]{0}', space=vmem, size = 0x1000, scoped, tag = 'input window, operand 0, single buffered']
    #allocation3 [shape = 's32[1]{0}', space=sflag, size = 0x4, scoped, tag = 'scoped memory for tpu_custom_call.1']
    #allocation4 [shape = 's32[1]{0}', space=sflag, size = 0x4, scoped, tag = 'scoped memory for tpu_custom_call.1']
    #allocation5 [shape = 'u8[4096]{0}', space=vmem, size = 0x1000, scoped, tag = 'input window, operand 1, single buffered']
    #allocation6 [shape = 's32[1]{0}', space=sflag, size = 0x4, scoped, tag = 'scoped memory for tpu_custom_call.1']
    #allocation7 [shape = 'u8[4096]{0}', space=vmem, size = 0x1000, scoped, tag = 'output window, operand 0, single buffered']
    %7 = vsyncpa [#allocation3], 0
    %8 = vsyncpa [#allocation6], 0
    %9 = vsyncpa [#allocation4], 0
    // Predicated region
    $region2: #{tpu_custom_call.1} parent=1 // pred_check
      _
    $region3: #{tpu_custom_call.1} parent=1 // pred_check_branch
      %11 = sbr.rel (0) target = $region5
    $region4: #{tpu_custom_call.1} parent=1 // pred_region
      %s13 = ssub.s32 128, 128
      %14 = vsyncadd [#allocation3], %s13
      %s16 = sshll.u32 [#allocation2], 4
      %s17 = int_to_ptr.vmem [resolvable:$true] %s16
      %19 = dma.hbm_to_vmem [thread:$0]  %s0, 128, %s17, [#allocation3]
    $region5: #{tpu_custom_call.1} parent=1 // pred_fallthru
      _
    // Predicated region
    $region6: #{tpu_custom_call.1} parent=1 // pred_check
      _
    $region7: #{tpu_custom_call.1} parent=1 // pred_check_branch
      %21 = sbr.rel (0) target = $region9
    $region8: #{tpu_custom_call.1} parent=1 // pred_region
      %s23 = ssub.s32 128, 128
      %24 = vsyncadd [#allocation6], %s23
      %s26 = sshll.u32 [#allocation5], 4
      %s27 = int_to_ptr.vmem [resolvable:$true] %s26
      %29 = dma.hbm_to_vmem [thread:$0]  %s1, 128, %s27, [#allocation6]
    $region9: #{tpu_custom_call.1} parent=1 // pred_fallthru
      _
    // Predicated region
    $region10: #{tpu_custom_call.1} parent=1 // pred_check
      _
    $region11: #{tpu_custom_call.1} parent=1 // pred_check_branch
      %31 = sbr.rel (0) target = $region13
    $region12: #{tpu_custom_call.1} parent=1 // pred_region
      %32 = dma.done [#allocation3], 128
    $region13: #{tpu_custom_call.1} parent=1 // pred_fallthru
      _
    // Predicated region
    $region14: #{tpu_custom_call.1} parent=1 // pred_check
      _
    $region15: #{tpu_custom_call.1} parent=1 // pred_check_branch
      %34 = sbr.rel (0) target = $region17
    $region16: #{tpu_custom_call.1} parent=1 // pred_region
      %35 = dma.done [#allocation6], 128
    $region17: #{tpu_custom_call.1} parent=1 // pred_fallthru
      _
    %p36 = scmp.eq.s32.totalorder 0, 0
    // Predicated region
    $region18: #{tpu_custom_call.1} parent=1 // pred_check
      %p37 = pneg %p36
    $region19: #{tpu_custom_call.1} parent=1 // pred_check_branch
      %39 = sbr.rel (%p37) target = $region21
    $region20: #{tpu_custom_call.1} parent=1 // pred_region
      %40 = vst [vmem:[#allocation7] sm:$0xff] 0.0
    $region21: #{tpu_custom_call.1} parent=1 // pred_fallthru
      _
    %v41 = vld [vmem:[#allocation2] sm:$0xff]
    %v42 = vld [vmem:[#allocation5] sm:$0xff]
    %v43 = vsub.f32 %v41, %v42
    %v44 = vadd.f32 %v43, 1e-12
    %v45 = vand.u32 2147483647, %v44
    %v46 = vmul.f32 %v45, -2.0
    %v47 = vmul.f32 %v46, 1.442695
    %v48 = vpow.pop %v47
    %v49 = vadd.f32 %v48, 1.0
    %v50 = vlog2.pop %v49
    %v51 = vmul.f32 %v50, 0.6931472
    %v52 = vmul.f32 -0.5, %v48
    %v53 = vadd.f32 %v52, 1.0
    %v54 = vmul.f32 %v53, %v48
    %v55 = vand.u32 2147483647, %v48
    %vm56 = vcmp.lt.f32.partialorder %v55, 0.0004427343
    %v57 = vsel %vm56, %v54, %v51
    %v58 = vadd.f32 %v45, %v57
    %v59 = vsub.f32 %v58, 0.6931472
    %v60 = vld [vmem:[#allocation7] sm:$0xff]
    %v61 = vadd.f32 %v59, 0.0
    %v62 = vadd.f32 %v60, %v61
    %63 = vst [vmem:[#allocation7] sm:$0xff] %v62
    // Predicated region
    $region22: #{tpu_custom_call.1} parent=1 // pred_check
      _
    $region23: #{tpu_custom_call.1} parent=1 // pred_check_branch
      %65 = sbr.rel (0) target = $region25
    $region24: #{tpu_custom_call.1} parent=1 // pred_region
      %s67 = ssub.s32 128, 128
      %68 = vsyncadd [#allocation4], %s67
      %s70 = sshll.u32 [#allocation7], 4
      %s71 = int_to_ptr.vmem [resolvable:$true] %s70
      %73 = dma.vmem_to_hbm [thread:$0]  %s71, 128, %s2, [#allocation4]
    $region25: #{tpu_custom_call.1} parent=1 // pred_fallthru
      _
    // Predicated region
    $region26: #{tpu_custom_call.1} parent=1 // pred_check
      _
    $region27: #{tpu_custom_call.1} parent=1 // pred_check_branch
      %75 = sbr.rel (0) target = $region29
    $region28: #{tpu_custom_call.1} parent=1 // pred_region
      %76 = dma.done [#allocation4], 128
    $region29: #{tpu_custom_call.1} parent=1 // pred_fallthru
      _
    %77 = vsyncpa [#allocation3], 1
    %78 = vsyncpa [#allocation6], 1
    %79 = vsyncpa [#allocation4], 1

</llo_original>
